<compile_context>
chip_gen: v7x
topology: tpu7x:2x2x1
jax: 0.10.0
libtpu: 0.0.40
codegen_flags: <defaults>
</compile_context>

<pallas_src>
import functools

import jax
import jax.numpy as jnp
from jax.experimental import pallas as pl
from jax.experimental.pallas import tpu as pltpu


def _round_up(x, m):
    return (x + m - 1) // m * m


def _sublane(dtype):
    # Minimum second-minor tile for the dtype's packing (f32: 8, bf16: 16, i8: 32).
    return max(8, 32 // jnp.dtype(dtype).itemsize)


def _link_predictor_kernel(xi_ref, xj_ref,
                           w1_ref, b1_ref,
                           w2_ref, b2_ref,
                           w3_ref, b3_ref,
                           o_ref, *, vpu_final):
    # Edge feature: elementwise product, kept in the (possibly bf16) input dtype.
    x = xi_ref[...] * xj_ref[...]

    # Hidden layer 1: MXU matmul with f32 accumulation; bias + ReLU in f32.
    h = jnp.dot(x, w1_ref[...], preferred_element_type=jnp.float32)
    h = jnp.maximum(h + b1_ref[...], 0.0)
    # TODO(synk): F.dropout is identity in eval mode; a training-mode mask would
    # be drawn in-kernel with pltpu.prng_seed / pltpu.prng_random_bits.

    # Hidden layer 2.
    h = jnp.dot(h.astype(w2_ref.dtype), w2_ref[...],
                preferred_element_type=jnp.float32)
    h = jnp.maximum(h + b2_ref[...], 0.0)

    if vpu_final:
        # out_channels == 1: w3 arrives transposed as (1, H).  VPU multiply +
        # XLU lane reduction; avoids a width-1 MXU matmul and its FIFO latency.
        z = jnp.sum(h * w3_ref[...].astype(jnp.float32), axis=-1, keepdims=True)
    else:
        z = jnp.dot(h.astype(w3_ref.dtype), w3_ref[...],
                    preferred_element_type=jnp.float32)
    o_ref[...] = jax.nn.sigmoid(z + b3_ref[...])


def link_predictor_forward(x_i, x_j, params, *, tile_n=1024,
                           vmem_budget_bytes=24 * 1024 * 1024):
    """params = ((w1, b1), (w2, b2), (w3, b3)); w_k is [in, out], b_k is [1, out]."""
    (w1, b1), (w2, b2), (w3, b3) = params
    N, C_in = x_i.shape
    assert x_j.shape == (N, C_in)
    H = w1.shape[1]
    C_out = w3.shape[1]

    x_bytes = jnp.dtype(x_i.dtype).itemsize
    vpu_final = (C_out == 1)
    w3_k = w3.T if vpu_final else w3              # (1, H) for the VPU epilogue
    b1 = b1.reshape(1, H).astype(jnp.float32)
    b2 = b2.reshape(1, H).astype(jnp.float32)
    b3 = b3.reshape(1, C_out).astype(jnp.float32)

    # ---- row-tile selection (bandwidth-bound => as large as VMEM allows) ----
    align = max(_sublane(x_i.dtype), _sublane(jnp.float32))
    n_al = _round_up(max(N, 1), align)
    t = min(_round_up(tile_n, align), n_al)

    # Keep double-buffered x_i/x_j/out streams + (double-buffered) weights
    # within a conservative budget (fits v7x's 32 MiB default scoped VMEM).
    stream_bytes_per_row = 2 * (2 * C_in * x_bytes + C_out * 4)
    resident_bytes = 2 * sum(int(a.size) * jnp.dtype(a.dtype).itemsize
                             for a in (w1, b1, w2, b2, w3_k, b3))
    max_rows = (vmem_budget_bytes - resident_bytes) // max(stream_bytes_per_row, 1)
    max_rows = max(align, (max_rows // align) * align)
    t = max(align, min(t, max_rows))

    # Prefer >=2 grid steps so the "parallel" axis can shard across v7x's 2 TCs.
    if _round_up(N, t) // t == 1 and t >= 2 * align:
        t = _round_up(t // 2, align)

    N_pad = _round_up(N, t)
    if N_pad != N:
        x_i = jnp.pad(x_i, ((0, N_pad - N), (0, 0)))
        x_j = jnp.pad(x_j, ((0, N_pad - N), (0, 0)))

    grid = (N_pad // t,)

    def row_map(i):
        return (i, 0)

    def fixed_map(i):
        return (0, 0)

    w_itemsize = jnp.dtype(w1.dtype).itemsize
    cost = pl.CostEstimate(
        flops=int(N_pad) * (C_in + 2 * C_in * H + 2 * H * H + 2 * H * C_out),
        transcendentals=int(N_pad) * C_out,
        bytes_accessed=(2 * int(N_pad) * C_in * x_bytes
                        + (C_in * H + H * H + H * C_out) * w_itemsize
                        + (2 * H + C_out) * 4
                        + int(N_pad) * C_out * 4),
    )

    out = pl.pallas_call(
        functools.partial(_link_predictor_kernel, vpu_final=vpu_final),
        out_shape=jax.ShapeDtypeStruct((N_pad, C_out), jnp.float32),
        grid_spec=pltpu.PrefetchScalarGridSpec(
            num_scalar_prefetch=0,
            grid=grid,
            in_specs=[
                pl.BlockSpec((t, C_in), row_map),       # x_i row tile
                pl.BlockSpec((t, C_in), row_map),       # x_j row tile
                pl.BlockSpec(w1.shape, fixed_map),      # w1 (grid-invariant)
                pl.BlockSpec(b1.shape, fixed_map),      # b1
                pl.BlockSpec(w2.shape, fixed_map),      # w2
                pl.BlockSpec(b2.shape, fixed_map),      # b2
                pl.BlockSpec(w3_k.shape, fixed_map),    # w3 (transposed if C_out==1)
                pl.BlockSpec(b3.shape, fixed_map),      # b3
            ],
            out_specs=pl.BlockSpec((t, C_out), row_map),
        ),
        compiler_params=pltpu.CompilerParams(
            dimension_semantics=("parallel",)),
        cost_estimate=cost,
    )(x_i, x_j, w1, b1, w2, b2, w3_k, b3)

    return out[:N]


def init_params(key, in_channels, hidden_channels, out_channels, num_layers):
    """PyTorch-Linear-style init: U(-1/sqrt(fan_in), 1/sqrt(fan_in)).

    Weights stored as [in, out] (transposed from torch's [out, in]) so the
    kernel computes x @ W + b.
    """
    dims = [in_channels] + [hidden_channels] * (num_layers - 1) + [out_channels]
    params = []
    for li in range(num_layers):
        fan_in, fan_out = dims[li], dims[li + 1]
        key, kw, kb = jax.random.split(key, 3)
        bound = 1.0 / jnp.sqrt(float(fan_in))
        w = jax.random.uniform(kw, (fan_in, fan_out), jnp.float32, -bound, bound)
        b = jax.random.uniform(kb, (1, fan_out), jnp.float32, -bound, bound)
        params.append((w, b))
    return tuple(params)


def reference_forward(x_i, x_j, params):
    """Mirrors the module's eval-mode math (and the kernel's compute dtypes)."""
    (w1, b1), (w2, b2), (w3, b3) = params
    x = x_i * x_j
    h = jnp.maximum(jnp.dot(x, w1, preferred_element_type=jnp.float32)
                    + b1.astype(jnp.float32), 0.0)
    h = jnp.maximum(jnp.dot(h.astype(w2.dtype), w2, preferred_element_type=jnp.float32)
                    + b2.astype(jnp.float32), 0.0)
    z = jnp.dot(h.astype(jnp.float32), w3.astype(jnp.float32),
                preferred_element_type=jnp.float32) + b3.astype(jnp.float32)
    return jax.nn.sigmoid(z)


if __name__ == "__main__":
    # LinkPredictor(in_channels=32, hidden_channels=32, out_channels=1,
    #               num_layers=3, dropout=0.5) in eval mode.
    IN_C, HID, OUT_C, NUM_LAYERS = 32, 32, 1, 3

    key = jax.random.PRNGKey(0)
    k_xi, k_xj, k_p = jax.random.split(key, 3)

    # ---- f32, even batch ----
    N = 16
    x_i = jax.random.normal(k_xi, (N, IN_C), jnp.float32)
    x_j = jax.random.normal(k_xj, (N, IN_C), jnp.float32)
    params = init_params(k_p, IN_C, HID, OUT_C, NUM_LAYERS)

    out = jax.block_until_ready(link_predictor_forward(x_i, x_j, params))
    ref = reference_forward(x_i, x_j, params)
    assert out.shape == (N, OUT_C)
    assert jnp.allclose(out, ref, atol=1e-5, rtol=1e-5)

    # ---- f32, ragged batch (exercises the zero-padding path) ----
    N2 = 13
    out2 = jax.block_until_ready(link_predictor_forward(x_i[:N2], x_j[:N2], params))
    assert out2.shape == (N2, OUT_C)
    assert jnp.allclose(out2, ref[:N2], atol=1e-5, rtol=1e-5)

    # ---- bf16 inputs/weights (halves the bandwidth-bound read traffic) ----
    x_i16, x_j16 = x_i.astype(jnp.bfloat16), x_j.astype(jnp.bfloat16)
    params16 = tuple((w.astype(jnp.bfloat16), b) for (w, b) in params)
    out16 = jax.block_until_ready(link_predictor_forward(x_i16, x_j16, params16))
    ref16 = reference_forward(x_i16, x_j16, params16)
    assert out16.shape == (N, OUT_C)
    assert jnp.allclose(out16, ref16, atol=1e-3, rtol=0)

    print("KERNEL_OK")
</pallas_src>

<mosaic_0001>
module attributes {stable_mosaic.version = 11 : i64} {
  func.func @_link_predictor_kernel(%arg0: i32, %arg1: memref<8x32xf32, #tpu.memory_space<vmem>>, %arg2: memref<8x32xf32, #tpu.memory_space<vmem>>, %arg3: memref<32x32xf32, #tpu.memory_space<vmem>>, %arg4: memref<1x32xf32, #tpu.memory_space<vmem>>, %arg5: memref<32x32xf32, #tpu.memory_space<vmem>>, %arg6: memref<1x32xf32, #tpu.memory_space<vmem>>, %arg7: memref<1x32xf32, #tpu.memory_space<vmem>>, %arg8: memref<1x1xf32, #tpu.memory_space<vmem>>, %arg9: memref<8x1xf32, #tpu.memory_space<vmem>>) attributes {dimension_semantics = [#tpu.dimension_semantics<parallel>], iteration_bounds = array<i64: 2>, scalar_prefetch = 0 : i64, scratch_operands = 0 : i64, tpu.core_type = #tpu.core_type<tc>, window_params = [{transform_indices = @transform_0, window_bounds = array<i64: 8, 32>}, {transform_indices = @transform_1, window_bounds = array<i64: 8, 32>}, {pipeline_mode = #tpu.pipeline_mode<synchronous>, transform_indices = @transform_2, window_bounds = array<i64: 32, 32>}, {pipeline_mode = #tpu.pipeline_mode<synchronous>, transform_indices = @transform_3, window_bounds = array<i64: 1, 32>}, {pipeline_mode = #tpu.pipeline_mode<synchronous>, transform_indices = @transform_4, window_bounds = array<i64: 32, 32>}, {pipeline_mode = #tpu.pipeline_mode<synchronous>, transform_indices = @transform_5, window_bounds = array<i64: 1, 32>}, {pipeline_mode = #tpu.pipeline_mode<synchronous>, transform_indices = @transform_6, window_bounds = array<i64: 1, 32>}, {pipeline_mode = #tpu.pipeline_mode<synchronous>, transform_indices = @transform_7, window_bounds = array<i64: 1, 1>}, {transform_indices = @transform_8, window_bounds = array<i64: 8, 1>}]} {
    %c0 = arith.constant 0 : index
    %c0_0 = arith.constant 0 : index
    %0 = vector.load %arg1[%c0, %c0_0] : memref<8x32xf32, #tpu.memory_space<vmem>>, vector<8x32xf32>
    %c0_1 = arith.constant 0 : index
    %c0_2 = arith.constant 0 : index
    %1 = vector.load %arg2[%c0_1, %c0_2] : memref<8x32xf32, #tpu.memory_space<vmem>>, vector<8x32xf32>
    %2 = arith.mulf %0, %1 : vector<8x32xf32>
    %c0_3 = arith.constant 0 : index
    %c0_4 = arith.constant 0 : index
    %3 = vector.load %arg3[%c0_3, %c0_4] : memref<32x32xf32, #tpu.memory_space<vmem>>, vector<32x32xf32>
    %cst = arith.constant dense<0.000000e+00> : vector<8x32xf32>
    %4 = tpu.matmul %2, %3, %cst {dimension_numbers = #tpu.dot_dimension_numbers<[1], [0], [0], [1], [0, 0, 1, 1], [], []>} : vector<8x32xf32>, vector<32x32xf32>, vector<8x32xf32> -> vector<8x32xf32>
    %c0_5 = arith.constant 0 : index
    %c0_6 = arith.constant 0 : index
    %5 = vector.load %arg4[%c0_5, %c0_6] : memref<1x32xf32, #tpu.memory_space<vmem>>, vector<1x32xf32>
    %6 = vector.broadcast %5 : vector<1x32xf32> to vector<8x32xf32>
    %7 = arith.addf %4, %6 : vector<8x32xf32>
    %cst_7 = arith.constant 0.000000e+00 : f32
    %8 = vector.broadcast %cst_7 : f32 to vector<8x32xf32>
    %9 = arith.maximumf %7, %8 : vector<8x32xf32>
    %c0_8 = arith.constant 0 : index
    %c0_9 = arith.constant 0 : index
    %10 = vector.load %arg5[%c0_8, %c0_9] : memref<32x32xf32, #tpu.memory_space<vmem>>, vector<32x32xf32>
    %cst_10 = arith.constant dense<0.000000e+00> : vector<8x32xf32>
    %11 = tpu.matmul %9, %10, %cst_10 {dimension_numbers = #tpu.dot_dimension_numbers<[1], [0], [0], [1], [0, 0, 1, 1], [], []>} : vector<8x32xf32>, vector<32x32xf32>, vector<8x32xf32> -> vector<8x32xf32>
    %c0_11 = arith.constant 0 : index
    %c0_12 = arith.constant 0 : index
    %12 = vector.load %arg6[%c0_11, %c0_12] : memref<1x32xf32, #tpu.memory_space<vmem>>, vector<1x32xf32>
    %13 = vector.broadcast %12 : vector<1x32xf32> to vector<8x32xf32>
    %14 = arith.addf %11, %13 : vector<8x32xf32>
    %cst_13 = arith.constant 0.000000e+00 : f32
    %15 = vector.broadcast %cst_13 : f32 to vector<8x32xf32>
    %16 = arith.maximumf %14, %15 : vector<8x32xf32>
    %c0_14 = arith.constant 0 : index
    %c0_15 = arith.constant 0 : index
    %17 = vector.load %arg7[%c0_14, %c0_15] : memref<1x32xf32, #tpu.memory_space<vmem>>, vector<1x32xf32>
    %18 = vector.broadcast %17 : vector<1x32xf32> to vector<8x32xf32>
    %19 = arith.mulf %16, %18 : vector<8x32xf32>
    %cst_16 = arith.constant dense<0.000000e+00> : vector<8xf32>
    %20 = vector.multi_reduction <add>, %19, %cst_16 [1] : vector<8x32xf32> to vector<8xf32>
    %21 = vector.shape_cast %20 : vector<8xf32> to vector<8x1xf32>
    %c0_17 = arith.constant 0 : index
    %c0_18 = arith.constant 0 : index
    %22 = vector.load %arg8[%c0_17, %c0_18] : memref<1x1xf32, #tpu.memory_space<vmem>>, vector<1x1xf32>
    %23 = vector.broadcast %22 : vector<1x1xf32> to vector<8x1xf32>
    %24 = arith.addf %21, %23 : vector<8x1xf32>
    %25 = arith.negf %24 : vector<8x1xf32>
    %26 = math.exp %25 : vector<8x1xf32>
    %cst_19 = arith.constant 1.000000e+00 : f32
    %27 = vector.broadcast %cst_19 : f32 to vector<8x1xf32>
    %28 = arith.addf %27, %26 : vector<8x1xf32>
    %29 = arith.divf %27, %28 : vector<8x1xf32>
    %c0_20 = arith.constant 0 : index
    %c0_21 = arith.constant 0 : index
    %30 = vector.load %arg9[%c0_20, %c0_21] : memref<8x1xf32, #tpu.memory_space<vmem>>, vector<8x1xf32>
    tpu.vector_store %arg9[%c0_20, %c0_21], %29 {strides = array<i32>} : memref<8x1xf32, #tpu.memory_space<vmem>>, vector<8x1xf32>,
    return
  }
  func.func @transform_0(%arg0: i32) -> (i32, i32) {
    %c0_i32 = arith.constant 0 : i32
    %c0_i32_0 = arith.constant 0 : i32
    return %arg0, %c0_i32 : i32, i32
  }
  func.func @transform_1(%arg0: i32) -> (i32, i32) {
    %c0_i32 = arith.constant 0 : i32
    %c0_i32_0 = arith.constant 0 : i32
    return %arg0, %c0_i32 : i32, i32
  }
  func.func @transform_2(%arg0: i32) -> (i32, i32) {
    %c0_i32 = arith.constant 0 : i32
    %c0_i32_0 = arith.constant 0 : i32
    %c0_i32_1 = arith.constant 0 : i32
    return %c0_i32, %c0_i32_0 : i32, i32
  }
  func.func @transform_3(%arg0: i32) -> (i32, i32) {
    %c0_i32 = arith.constant 0 : i32
    %c0_i32_0 = arith.constant 0 : i32
    %c0_i32_1 = arith.constant 0 : i32
    return %c0_i32, %c0_i32_0 : i32, i32
  }
  func.func @transform_4(%arg0: i32) -> (i32, i32) {
    %c0_i32 = arith.constant 0 : i32
    %c0_i32_0 = arith.constant 0 : i32
    %c0_i32_1 = arith.constant 0 : i32
    return %c0_i32, %c0_i32_0 : i32, i32
  }
  func.func @transform_5(%arg0: i32) -> (i32, i32) {
    %c0_i32 = arith.constant 0 : i32
    %c0_i32_0 = arith.constant 0 : i32
    %c0_i32_1 = arith.constant 0 : i32
    return %c0_i32, %c0_i32_0 : i32, i32
  }
  func.func @transform_6(%arg0: i32) -> (i32, i32) {
    %c0_i32 = arith.constant 0 : i32
    %c0_i32_0 = arith.constant 0 : i32
    %c0_i32_1 = arith.constant 0 : i32
    return %c0_i32, %c0_i32_0 : i32, i32
  }
  func.func @transform_7(%arg0: i32) -> (i32, i32) {
    %c0_i32 = arith.constant 0 : i32
    %c0_i32_0 = arith.constant 0 : i32
    %c0_i32_1 = arith.constant 0 : i32
    return %c0_i32, %c0_i32_0 : i32, i32
  }
  func.func @transform_8(%arg0: i32) -> (i32, i32) {
    %c0_i32 = arith.constant 0 : i32
    %c0_i32_0 = arith.constant 0 : i32
    return %arg0, %c0_i32 : i32, i32
  }
}

</mosaic_0001>

<llo_original>
// kernel: tpu_custom_call.1
$region0: #{tpu_custom_call.1}
  #allocation0 [shape = 'u32[]', space=smem, size = 0x4, offset = 0x4, fixed_abs, tag = 'smem constant byte address 0x4 - core index']
  #allocation1 [shape = 'u32[144,128]{1,0:T(1,128)}', space=vmem, size = 0x12000, scoped, tag = 'internal scratch']
  #allocation2 [shape = 'f32[1,1]{1,0:T(1,128)S(1)}', space=vmem, size = 0x200, scoped, tag = 'scoped memory for tpu_custom_call.1']
  %s0 = inlined_call_operand.hbm [shape: f32[16,32], index: 0, kind: input, shape index: {}]
  %s1 = inlined_call_operand.hbm [shape: f32[16,32], index: 1, kind: input, shape index: {}]
  %s2 = inlined_call_operand.hbm [shape: f32[32,32], index: 2, kind: input, shape index: {}]
  %s3 = inlined_call_operand.vmem [shape: f32[1,32], index: 3, kind: input, shape index: {}]
  %s4 = inlined_call_operand.hbm [shape: f32[32,32], index: 4, kind: input, shape index: {}]
  %s5 = inlined_call_operand.vmem [shape: f32[1,32], index: 5, kind: input, shape index: {}]
  %s6 = inlined_call_operand.vmem [shape: f32[1,32], index: 6, kind: input, shape index: {}]
  %s7 = inlined_call_operand.<no memory space> [shape: f32[1,1], index: 7, kind: input, shape index: {}]
  %s8 = inlined_call_operand.vmem [shape: f32[16,1], index: 8, kind: output, shape index: {}]
  %s9 = sld [smem:[#allocation0]]
  $region81: #{tpu_custom_call.1} parent=0
    _
  %s11 = ssub.s32 1, %s9
  %s12 = scalar_select 0, %s11, %s9
  %v13 = vstv %s7
  %14 = vst [vmem:[#allocation2] sm:$0x1] %v13
  $region1: #{tpu_custom_call.1} parent=0
    #allocation3 [shape = 'u8[8192]{0}', space=vmem, size = 0x2000, scoped, tag = 'input window, operand 0']
    #allocation4 [shape = 's32[2]{0}', space=sflag, size = 0x8, scoped, tag = 'scoped memory for tpu_custom_call.1']
    #allocation5 [shape = 'u8[8192]{0}', space=vmem, size = 0x2000, scoped, tag = 'input window, operand 1']
    #allocation6 [shape = 's32[2]{0}', space=sflag, size = 0x8, scoped, tag = 'scoped memory for tpu_custom_call.1']
    #allocation7 [shape = 'u8[16384]{0}', space=vmem, size = 0x4000, scoped, tag = 'input window, operand 2, single buffered']
    #allocation8 [shape = 'u8[16384]{0}', space=vmem, size = 0x4000, scoped, tag = 'input window, operand 4, single buffered']
    #allocation9 [shape = 's32[1]{0}', space=sflag, size = 0x4, scoped, tag = 'scoped memory for tpu_custom_call.1']
    %15 = vsyncpa [#allocation4], 0
    %s16 = scalar_lea.sflag [#allocation4], 1
    %17 = vsyncpa %s16, 0
    %18 = vsyncpa [#allocation6], 0
    %s19 = scalar_lea.sflag [#allocation6], 1
    %20 = vsyncpa %s19, 0
    %21 = vsyncpa [#allocation9], 0
    loop: start=0, step=1, limit=4
    $region2: #{tpu_custom_call.1} parent=1 // loop_pre_header
      _
    $region3: #{tpu_custom_call.1} parent=1 // loop_header
      %s23 = sphi 0, %s27
      %p24 = scmp.ge.s32.totalorder %s23, 4
      %s33 = sphi 0, %s35
      %s36 = sphi 0, %s33
      %s37 = sphi 0, %s36
      %s53 = sphi 0, %s37
      %s59 = sphi 0, %s61
      %s62 = sphi 0, %s59
      %s63 = sphi 0, %s62
      %s79 = sphi 0, %s63
      %s83 = sphi 0, %s83
      %s85 = sphi 0, %s83
      %s86 = sphi 0, %s85
      %s100 = sphi 0, %s86
      %s104 = sphi 0, %s104
      %s106 = sphi 0, %s104
      %s107 = sphi 0, %s106
      %s121 = sphi 0, %s107
      %s125 = sphi 0, %s125
      %s127 = sphi 0, %s125
      %s128 = sphi 0, %s127
      %s142 = sphi 0, %s128
      %s146 = sphi 0, %s146
      %s148 = sphi 0, %s146
      %s149 = sphi 0, %s148
      %s163 = sphi 0, %s149
      %s167 = sphi 0, %s167
      %s169 = sphi 0, %s167
      %s170 = sphi 0, %s169
      %s184 = sphi 0, %s170
      %s188 = sphi 0, %s188
      %s190 = sphi 0, %s188
      %s191 = sphi 0, %s190
      %s205 = sphi 0, %s191
      %s211 = sphi 0, %s213
      %s214 = sphi 0, %s211
      %s215 = sphi 0, %s214
      %s231 = sphi 0, %s215
    $region4: #{tpu_custom_call.1} parent=1 // loop_header_branch
      %26 = sbr.rel (%p24) target = $region8
    $region5: #{tpu_custom_call.1} parent=1 // loop_body
      %s28 = ssub.s32 %s23, 1
      %s29 = ssub.s32 %s23, 2
      %s30 = sadd.s32 %s23, 1
      %s31 = ssub.s32 %s23, %s30
      %p32 = scmp.eq.s32.totalorder %s31, 0
      %s34 = sadd.s32 %s33, 1
      %s35 = scalar_select %p32, %s33, %s34
      %p38 = pneg %p32
      %p39 = scmp.eq.s32.totalorder %s23, 1
      %p40 = por %p38, %p39
      %p41 = scmp.ne.s32.totalorder %s33, %s36
      %p42 = scmp.eq.s32.totalorder %s23, 0
      %p43 = por %p41, %p42
      %p44 = scmp.ne.s32.totalorder %s33, %s36
      %p45 = scmp.eq.s32.totalorder %s28, 1
      %p46 = por %p44, %p45
      %p47 = scmp.ne.s32.totalorder %s36, %s37
      %p48 = scmp.eq.s32.totalorder %s28, 0
      %p49 = por %p47, %p48
      %p50 = scmp.ne.s32.totalorder %s36, %s37
      %p51 = scmp.eq.s32.totalorder %s29, 1
      %p52 = por %p50, %p51
      %p54 = scmp.ne.s32.totalorder %s37, %s53
      %p55 = scmp.eq.s32.totalorder %s29, 0
      %p56 = por %p54, %p55
      %s57 = ssub.s32 %s23, %s30
      %p58 = scmp.eq.s32.totalorder %s57, 0
      %s60 = sadd.s32 %s59, 1
      %s61 = scalar_select %p58, %s59, %s60
      %p64 = pneg %p58
      %p65 = scmp.eq.s32.totalorder %s23, 1
      %p66 = por %p64, %p65
      %p67 = scmp.ne.s32.totalorder %s59, %s62
      %p68 = scmp.eq.s32.totalorder %s23, 0
      %p69 = por %p67, %p68
      %p70 = scmp.ne.s32.totalorder %s59, %s62
      %p71 = scmp.eq.s32.totalorder %s28, 1
      %p72 = por %p70, %p71
      %p73 = scmp.ne.s32.totalorder %s62, %s63
      %p74 = scmp.eq.s32.totalorder %s28, 0
      %p75 = por %p73, %p74
      %p76 = scmp.ne.s32.totalorder %s62, %s63
      %p77 = scmp.eq.s32.totalorder %s29, 1
      %p78 = por %p76, %p77
      %p80 = scmp.ne.s32.totalorder %s63, %s79
      %p81 = scmp.eq.s32.totalorder %s29, 0
      %p82 = por %p80, %p81
      %s84 = sadd.s32 %s83, 1
      %p87 = scmp.eq.s32.totalorder %s23, 1
      %p88 = scmp.ne.s32.totalorder %s83, %s85
      %p89 = scmp.eq.s32.totalorder %s23, 0
      %p90 = por %p88, %p89
      %p91 = scmp.ne.s32.totalorder %s83, %s85
      %p92 = scmp.eq.s32.totalorder %s28, 1
      %p93 = por %p91, %p92
      %p94 = scmp.ne.s32.totalorder %s85, %s86
      %p95 = scmp.eq.s32.totalorder %s28, 0
      %p96 = por %p94, %p95
      %p97 = scmp.ne.s32.totalorder %s85, %s86
      %p98 = scmp.eq.s32.totalorder %s29, 1
      %p99 = por %p97, %p98
      %p101 = scmp.ne.s32.totalorder %s86, %s100
      %p102 = scmp.eq.s32.totalorder %s29, 0
      %p103 = por %p101, %p102
      %s105 = sadd.s32 %s104, 1
      %p108 = scmp.eq.s32.totalorder %s23, 1
      %p109 = scmp.ne.s32.totalorder %s104, %s106
      %p110 = scmp.eq.s32.totalorder %s23, 0
      %p111 = por %p109, %p110
      %p112 = scmp.ne.s32.totalorder %s104, %s106
      %p113 = scmp.eq.s32.totalorder %s28, 1
      %p114 = por %p112, %p113
      %p115 = scmp.ne.s32.totalorder %s106, %s107
      %p116 = scmp.eq.s32.totalorder %s28, 0
      %p117 = por %p115, %p116
      %p118 = scmp.ne.s32.totalorder %s106, %s107
      %p119 = scmp.eq.s32.totalorder %s29, 1
      %p120 = por %p118, %p119
      %p122 = scmp.ne.s32.totalorder %s107, %s121
      %p123 = scmp.eq.s32.totalorder %s29, 0
      %p124 = por %p122, %p123
      %s126 = sadd.s32 %s125, 1
      %p129 = scmp.eq.s32.totalorder %s23, 1
      %p130 = scmp.ne.s32.totalorder %s125, %s127
      %p131 = scmp.eq.s32.totalorder %s23, 0
      %p132 = por %p130, %p131
      %p133 = scmp.ne.s32.totalorder %s125, %s127
      %p134 = scmp.eq.s32.totalorder %s28, 1
      %p135 = por %p133, %p134
      %p136 = scmp.ne.s32.totalorder %s127, %s128
      %p137 = scmp.eq.s32.totalorder %s28, 0
      %p138 = por %p136, %p137
      %p139 = scmp.ne.s32.totalorder %s127, %s128
      %p140 = scmp.eq.s32.totalorder %s29, 1
      %p141 = por %p139, %p140
      %p143 = scmp.ne.s32.totalorder %s128, %s142
      %p144 = scmp.eq.s32.totalorder %s29, 0
      %p145 = por %p143, %p144
      %s147 = sadd.s32 %s146, 1
      %p150 = scmp.eq.s32.totalorder %s23, 1
      %p151 = scmp.ne.s32.totalorder %s146, %s148
      %p152 = scmp.eq.s32.totalorder %s23, 0
      %p153 = por %p151, %p152
      %p154 = scmp.ne.s32.totalorder %s146, %s148
      %p155 = scmp.eq.s32.totalorder %s28, 1
      %p156 = por %p154, %p155
      %p157 = scmp.ne.s32.totalorder %s148, %s149
      %p158 = scmp.eq.s32.totalorder %s28, 0
      %p159 = por %p157, %p158
      %p160 = scmp.ne.s32.totalorder %s148, %s149
      %p161 = scmp.eq.s32.totalorder %s29, 1
      %p162 = por %p160, %p161
      %p164 = scmp.ne.s32.totalorder %s149, %s163
      %p165 = scmp.eq.s32.totalorder %s29, 0
      %p166 = por %p164, %p165
      %s168 = sadd.s32 %s167, 1
      %p171 = scmp.eq.s32.totalorder %s23, 1
      %p172 = scmp.ne.s32.totalorder %s167, %s169
      %p173 = scmp.eq.s32.totalorder %s23, 0
      %p174 = por %p172, %p173
      %p175 = scmp.ne.s32.totalorder %s167, %s169
      %p176 = scmp.eq.s32.totalorder %s28, 1
      %p177 = por %p175, %p176
      %p178 = scmp.ne.s32.totalorder %s169, %s170
      %p179 = scmp.eq.s32.totalorder %s28, 0
      %p180 = por %p178, %p179
      %p181 = scmp.ne.s32.totalorder %s169, %s170
      %p182 = scmp.eq.s32.totalorder %s29, 1
      %p183 = por %p181, %p182
      %p185 = scmp.ne.s32.totalorder %s170, %s184
      %p186 = scmp.eq.s32.totalorder %s29, 0
      %p187 = por %p185, %p186
      %s189 = sadd.s32 %s188, 1
      %p192 = scmp.eq.s32.totalorder %s23, 1
      %p193 = scmp.ne.s32.totalorder %s188, %s190
      %p194 = scmp.eq.s32.totalorder %s23, 0
      %p195 = por %p193, %p194
      %p196 = scmp.ne.s32.totalorder %s188, %s190
      %p197 = scmp.eq.s32.totalorder %s28, 1
      %p198 = por %p196, %p197
      %p199 = scmp.ne.s32.totalorder %s190, %s191
      %p200 = scmp.eq.s32.totalorder %s28, 0
      %p201 = por %p199, %p200
      %p202 = scmp.ne.s32.totalorder %s190, %s191
      %p203 = scmp.eq.s32.totalorder %s29, 1
      %p204 = por %p202, %p203
      %p206 = scmp.ne.s32.totalorder %s191, %s205
      %p207 = scmp.eq.s32.totalorder %s29, 0
      %p208 = por %p206, %p207
      %s209 = ssub.s32 %s23, %s30
      %p210 = scmp.eq.s32.totalorder %s209, 0
      %s212 = sadd.s32 %s211, 1
      %s213 = scalar_select %p210, %s211, %s212
      %p216 = pneg %p210
      %p217 = scmp.eq.s32.totalorder %s23, 1
      %p218 = por %p216, %p217
      %p219 = scmp.ne.s32.totalorder %s211, %s214
      %p220 = scmp.eq.s32.totalorder %s23, 0
      %p221 = por %p219, %p220
      %p222 = scmp.ne.s32.totalorder %s211, %s214
      %p223 = scmp.eq.s32.totalorder %s28, 1
      %p224 = por %p222, %p223
      %p225 = scmp.ne.s32.totalorder %s214, %s215
      %p226 = scmp.eq.s32.totalorder %s28, 0
      %p227 = por %p225, %p226
      %p228 = scmp.ne.s32.totalorder %s214, %s215
      %p229 = scmp.eq.s32.totalorder %s29, 1
      %p230 = por %p228, %p229
      %p232 = scmp.ne.s32.totalorder %s215, %s231
      %p233 = scmp.eq.s32.totalorder %s29, 0
      %p234 = por %p232, %p233
      %p235 = scmp.le.s32.totalorder 1, %s23
      %p236 = scmp.lt.s32.totalorder %s23, 3
      %p237 = pnand %p235, %p236
      %p238 = pneg %p237
      // Predicated region
      $region9: #{tpu_custom_call.1} parent=5 // pred_check
        _
      $region10: #{tpu_custom_call.1} parent=5 // pred_check_branch
        %240 = sbr.rel (%p237) target = $region12
      $region11: #{tpu_custom_call.1} parent=5 // pred_region
        %s241 = ssub.s32 %s23, 1
        // Predicated region
        $region13: #{tpu_custom_call.1} parent=11 // pred_check
          %p242 = pneg %p96
        $region14: #{tpu_custom_call.1} parent=11 // pred_check_branch
          %244 = sbr.rel (%p242) target = $region16
        $region15: #{tpu_custom_call.1} parent=11 // pred_region
          %s246 = ssub.s32 512, 512
          %247 = vsyncadd [#allocation6], %s246
          %s248 = sshll.u32 [#allocation7], 4
          %s249 = int_to_ptr.vmem [resolvable:$true] %s248
          %254 = dma.hbm_to_vmem [thread:$0]  %s2, 512, %s249, [#allocation6], 128, 128, 8
        $region16: #{tpu_custom_call.1} parent=11 // pred_fallthru
          _
        // Predicated region
        $region17: #{tpu_custom_call.1} parent=11 // pred_check
          %p255 = pneg %p117
        $region18: #{tpu_custom_call.1} parent=11 // pred_check_branch
          %257 = sbr.rel (%p255) target = $region20
        $region19: #{tpu_custom_call.1} parent=11 // pred_region
          _
        $region20: #{tpu_custom_call.1} parent=11 // pred_fallthru
          _
        // Predicated region
        $region21: #{tpu_custom_call.1} parent=11 // pred_check
          %p258 = pneg %p138
        $region22: #{tpu_custom_call.1} parent=11 // pred_check_branch
          %260 = sbr.rel (%p258) target = $region24
        $region23: #{tpu_custom_call.1} parent=11 // pred_region
          %s262 = ssub.s32 512, 512
          %263 = vsyncadd [#allocation9], %s262
          %s264 = sshll.u32 [#allocation8], 4
          %s265 = int_to_ptr.vmem [resolvable:$true] %s264
          %270 = dma.hbm_to_vmem [thread:$0]  %s4, 512, %s265, [#allocation9], 128, 128, 8
        $region24: #{tpu_custom_call.1} parent=11 // pred_fallthru
          _
        // Predicated region
        $region25: #{tpu_custom_call.1} parent=11 // pred_check
          %p271 = pneg %p159
        $region26: #{tpu_custom_call.1} parent=11 // pred_check_branch
          %273 = sbr.rel (%p271) target = $region28
        $region27: #{tpu_custom_call.1} parent=11 // pred_region
          _
        $region28: #{tpu_custom_call.1} parent=11 // pred_fallthru
          _
        // Predicated region
        $region29: #{tpu_custom_call.1} parent=11 // pred_check
          %p274 = pneg %p180
        $region30: #{tpu_custom_call.1} parent=11 // pred_check_branch
          %276 = sbr.rel (%p274) target = $region32
        $region31: #{tpu_custom_call.1} parent=11 // pred_region
          _
        $region32: #{tpu_custom_call.1} parent=11 // pred_fallthru
          _
        // Predicated region
        $region33: #{tpu_custom_call.1} parent=11 // pred_check
          %p277 = pneg %p201
        $region34: #{tpu_custom_call.1} parent=11 // pred_check_branch
          %279 = sbr.rel (%p277) target = $region36
        $region35: #{tpu_custom_call.1} parent=11 // pred_region
          _
        $region36: #{tpu_custom_call.1} parent=11 // pred_fallthru
          _
      $region12: #{tpu_custom_call.1} parent=5 // pred_fallthru
        _
      %p280 = scmp.lt.s32.totalorder %s23, 2
      // Predicated region
      $region37: #{tpu_custom_call.1} parent=5 // pred_check
        %p281 = pneg %p280
      $region38: #{tpu_custom_call.1} parent=5 // pred_check_branch
        %283 = sbr.rel (%p281) target = $region40
      $region39: #{tpu_custom_call.1} parent=5 // pred_region
        // Predicated region
        $region41: #{tpu_custom_call.1} parent=39 // pred_check
          %p284 = pneg %p43
        $region42: #{tpu_custom_call.1} parent=39 // pred_check_branch
          %286 = sbr.rel (%p284) target = $region44
        $region43: #{tpu_custom_call.1} parent=39 // pred_region
          %s287 = sand.u32 %s33, 1
          %s288 = scalar_lea.sflag [#allocation4], %s287
          %s289 = sand.u32 %s33, 1
          %s290 = smul.addr %s289, 8
          %s291 = scalar_lea.vmem [#allocation3], %s290
          %s293 = ssub.s32 128, 128
          %294 = vsyncadd %s288, %s293
          %s295 = smul.addr %s23, 128
          %s296 = scalar_lea.hbm %s0, %s295
          %s298 = sshll.u32 %s291, 4
          %s299 = int_to_ptr.vmem [resolvable:$true] %s298
          %301 = dma.hbm_to_vmem [thread:$0]  %s296, 128, %s299, %s288
        $region44: #{tpu_custom_call.1} parent=39 // pred_fallthru
          _
        // Predicated region
        $region45: #{tpu_custom_call.1} parent=39 // pred_check
          %p302 = pneg %p69
        $region46: #{tpu_custom_call.1} parent=39 // pred_check_branch
          %304 = sbr.rel (%p302) target = $region48
        $region47: #{tpu_custom_call.1} parent=39 // pred_region
          %s305 = sand.u32 %s23, 1
          %s306 = scalar_lea.sflag [#allocation6], %s305
          %s307 = sand.u32 %s59, 1
          %s308 = smul.addr %s307, 8
          %s309 = scalar_lea.vmem [#allocation5], %s308
          %s311 = ssub.s32 128, 128
          %312 = vsyncadd %s306, %s311
          %s313 = smul.addr %s23, 128
          %s314 = scalar_lea.hbm %s1, %s313
          %s316 = sshll.u32 %s309, 4
          %s317 = int_to_ptr.vmem [resolvable:$true] %s316
          %319 = dma.hbm_to_vmem [thread:$0]  %s314, 128, %s317, %s306
        $region48: #{tpu_custom_call.1} parent=39 // pred_fallthru
          _
      $region40: #{tpu_custom_call.1} parent=5 // pred_fallthru
        _
      %p320 = scmp.le.s32.totalorder 1, %s23
      %p321 = scmp.lt.s32.totalorder %s23, 3
      %p322 = pnand %p320, %p321
      %p323 = pneg %p322
      // Predicated region
      $region49: #{tpu_custom_call.1} parent=5 // pred_check
        _
      $region50: #{tpu_custom_call.1} parent=5 // pred_check_branch
        %325 = sbr.rel (%p322) target = $region52
      $region51: #{tpu_custom_call.1} parent=5 // pred_region
        %s326 = ssub.s32 %s23, 1
        %s327 = sand.u32 %s36, 1
        %s328 = scalar_lea.sflag [#allocation4], %s327
        %s329 = sand.u32 %s36, 1
        %s330 = smul.addr %s329, 8
        %s331 = scalar_lea.vmem [#allocation3], %s330
        // Predicated region
        $region53: #{tpu_custom_call.1} parent=51 // pred_check
          %p332 = pneg %p49
        $region54: #{tpu_custom_call.1} parent=51 // pred_check_branch
          %334 = sbr.rel (%p332) target = $region56
        $region55: #{tpu_custom_call.1} parent=51 // pred_region
          %335 = dma.done %s328, 128
        $region56: #{tpu_custom_call.1} parent=51 // pred_fallthru
          _
        %s336 = sand.u32 %s28, 1
        %s337 = scalar_lea.sflag [#allocation6], %s336
        %s338 = sand.u32 %s62, 1
        %s339 = smul.addr %s338, 8
        %s340 = scalar_lea.vmem [#allocation5], %s339
        // Predicated region
        $region57: #{tpu_custom_call.1} parent=51 // pred_check
          %p341 = pneg %p75
        $region58: #{tpu_custom_call.1} parent=51 // pred_check_branch
          %343 = sbr.rel (%p341) target = $region60
        $region59: #{tpu_custom_call.1} parent=51 // pred_region
          %344 = dma.done %s337, 128
        $region60: #{tpu_custom_call.1} parent=51 // pred_fallthru
          _
        // Predicated region
        $region61: #{tpu_custom_call.1} parent=51 // pred_check
          %p345 = pneg %p96
        $region62: #{tpu_custom_call.1} parent=51 // pred_check_branch
          %347 = sbr.rel (%p345) target = $region64
        $region63: #{tpu_custom_call.1} parent=51 // pred_region
          %348 = dma.done [#allocation6], 512
        $region64: #{tpu_custom_call.1} parent=51 // pred_fallthru
          _
        // Predicated region
        $region65: #{tpu_custom_call.1} parent=51 // pred_check
          %p349 = pneg %p138
        $region66: #{tpu_custom_call.1} parent=51 // pred_check_branch
          %351 = sbr.rel (%p349) target = $region68
        $region67: #{tpu_custom_call.1} parent=51 // pred_region
          %352 = dma.done [#allocation9], 512
        $region68: #{tpu_custom_call.1} parent=51 // pred_fallthru
          _
        %s353 = sand.u32 %s36, 1
        %s354 = scalar_lea.sflag [#allocation4], %s353
        %s355 = sand.u32 %s36, 1
        %s356 = smul.addr %s355, 8
        %s357 = scalar_lea.vmem [#allocation3], %s356
        %p358 = pneg %p49
        %p359 = pneg %p46
        %s360 = sand.u32 %s28, 1
        %s361 = scalar_lea.sflag [#allocation6], %s360
        %s362 = sand.u32 %s62, 1
        %s363 = smul.addr %s362, 8
        %s364 = scalar_lea.vmem [#allocation5], %s363
        %p365 = pneg %p75
        %p366 = pneg %p72
        %p367 = pneg %p96
        %p368 = pneg %p93
        %p369 = pneg %p117
        %p370 = pneg %p114
        %p371 = pneg %p138
        %p372 = pneg %p135
        %p373 = pneg %p159
        %p374 = pneg %p156
        %p375 = pneg %p180
        %p376 = pneg %p177
        %p377 = pneg %p201
        %p378 = pneg %p198
        %p379 = pneg %p227
        %p380 = pneg %p224
        %p381 = scmp.lt.s32.totalorder %s28, 1
        %s382 = scalar_select %p381, %s28, 1
        %s383 = smul.addr %s382, 8
        %s384 = scalar_lea.vmem %s8, %s383
        %p385 = scmp.lt.s32.totalorder %s28, 1
        %s386 = scalar_select %p385, %s28, 1
        %s387 = smul.addr %s386, 8
        %s388 = scalar_lea.vmem %s8, %s387
        %v389 = vld [vmem:[%s331] sm:$0xff]
        %v390 = vld [vmem:[%s340] sm:$0xff]
        %v391 = vmul.f32 %v389, %v390
        %v392 = vld [vmem:[#allocation7] sm:$0xff]
        %v393 = vld [vmem:[#allocation7 + $0x8] sm:$0xff]
        %v394 = vld [vmem:[#allocation7 + $0x10] sm:$0xff]
        %v395 = vld [vmem:[#allocation7 + $0x18] sm:$0xff]
        %v396 = vld [vmem:[%s3] sm:$0x1]
        %v398 = vlaneseq
        %v399 = vshrl.u32 %v398, 7
        %v400 = vsub.s32 0, %v399
        %v401 = vrot.slane %v396, %v400
        %vm403 = vcmask 261120
        %v405 = vsel %vm403, %v391, 0
        %407 = vmatprep.subr.mxu0 0.0
        %408 = vmatpush1.msra.mxu0 %v392
        %409 = vmatprep.subr.mxu0 0.0
        %410 = vmatpush1.msra.mxu0 %v393
        %411 = vmatprep.subr.mxu0 0.0
        %412 = vmatpush1.msra.mxu0 %v394
        %413 = vmatprep.subr.mxu0 0.0
        %414 = vmatpush1.msra.mxu0 %v395
        %415 = vmatprep.subr.mxu0 0.0
        %416 = vmatpush1.msra.mxu0 0.0
        %417 = vmatprep.subr.mxu0 0.0
        %418 = vmatpush1.msra.mxu0 0.0
        %419 = vmatprep.subr.mxu0 0.0
        %420 = vmatpush1.msra.mxu0 0.0
        %421 = vmatprep.subr.mxu0 0.0
        %422 = vmatpush1.msra.mxu0 0.0
        %423 = vmatprep.subr.mxu0 0.0
        %424 = vmatpush1.msra.mxu0 0.0
        %425 = vmatprep.subr.mxu0 0.0
        %426 = vmatpush1.msra.mxu0 0.0
        %427 = vmatprep.subr.mxu0 0.0
        %428 = vmatpush1.msra.mxu0 0.0
        %429 = vmatprep.subr.mxu0 0.0
        %430 = vmatpush1.msra.mxu0 0.0
        %431 = vmatprep.subr.mxu0 0.0
        %432 = vmatpush1.msra.mxu0 0.0
        %433 = vmatprep.subr.mxu0 0.0
        %434 = vmatpush1.msra.mxu0 0.0
        %435 = vmatprep.subr.mxu0 0.0
        %436 = vmatpush1.msra.mxu0 0.0
        %437 = vmatprep.subr.mxu0 0.0
        %438 = vmatpush1.msra.mxu0 0.0
        %439 = vmatprep.subr.mxu0 0.0
        %440 = vmatpush1.msra.mxu0 0.0
        %441 = vmatprep.subr.mxu0 0.0
        %442 = vmatpush1.msra.mxu0 0.0
        %443 = vmatprep.subr.mxu0 0.0
        %444 = vmatpush1.msra.mxu0 0.0
        %445 = vmatprep.subr.mxu0 0.0
        %446 = vmatpush1.msra.mxu0 0.0
        %447 = vmatprep.subr.mxu0 0.0
        %448 = vmatpush1.msra.mxu0 0.0
        %449 = vmatprep.subr.mxu0 0.0
        %450 = vmatpush1.msra.mxu0 0.0
        %451 = vmatprep.subr.mxu0 0.0
        %452 = vmatpush1.msra.mxu0 0.0
        %453 = vmatprep.subr.mxu0 0.0
        %454 = vmatpush1.msra.mxu0 0.0
        %455 = vmatprep.subr.mxu0 0.0
        %456 = vmatpush1.msra.mxu0 0.0
        %457 = vmatprep.subr.mxu0 0.0
        %458 = vmatpush1.msra.mxu0 0.0
        %459 = vmatprep.subr.mxu0 0.0
        %460 = vmatpush1.msra.mxu0 0.0
        %461 = vmatprep.subr.mxu0 0.0
        %462 = vmatpush1.msra.mxu0 0.0
        %463 = vmatprep.subr.mxu0 0.0
        %464 = vmatpush1.msra.mxu0 0.0
        %465 = vmatprep.subr.mxu0 0.0
        %466 = vmatpush1.msra.mxu0 0.0
        %467 = vmatprep.subr.mxu0 0.0
        %468 = vmatpush1.msra.mxu0 0.0
        %469 = vmatprep.subr.mxu0 0.0
        %470 = vmatpush1.msra.mxu0 0.0
        %471 = vmatprep.mubr.f32.mxu0 0.0
        %472 = vmatmul.mubr.f32.gmra.mrb[0].mxu0 %v405
        %v473 = vpop.f32.mrb[0].mxu0
        %v474 = vadd.f32 %v401, %v473
        %v475 = vpop.f32.mrb[0].mxu0
        %476 = vdwg.mxu0
        %v477 = vmax.f32 %v474, 0.0
        %v478 = vld [vmem:[#allocation8] sm:$0xff]
        %v479 = vld [vmem:[#allocation8 + $0x8] sm:$0xff]
        %v480 = vld [vmem:[#allocation8 + $0x10] sm:$0xff]
        %v481 = vld [vmem:[#allocation8 + $0x18] sm:$0xff]
        %v482 = vld [vmem:[%s5] sm:$0x1]
        %v484 = vlaneseq
        %v485 = vshrl.u32 %v484, 7
        %v486 = vsub.s32 0, %v485
        %v487 = vrot.slane %v482, %v486
        %v490 = vsel %vm403, %v477, 0
        %492 = vmatprep.subr.mxu0 0.0
        %493 = vmatpush1.msra.mxu0 %v478
        %494 = vmatprep.subr.mxu0 0.0
        %495 = vmatpush1.msra.mxu0 %v479
        %496 = vmatprep.subr.mxu0 0.0
        %497 = vmatpush1.msra.mxu0 %v480
        %498 = vmatprep.subr.mxu0 0.0
        %499 = vmatpush1.msra.mxu0 %v481
        %500 = vmatprep.subr.mxu0 0.0
        %501 = vmatpush1.msra.mxu0 0.0
        %502 = vmatprep.subr.mxu0 0.0
        %503 = vmatpush1.msra.mxu0 0.0
        %504 = vmatprep.subr.mxu0 0.0
        %505 = vmatpush1.msra.mxu0 0.0
        %506 = vmatprep.subr.mxu0 0.0
        %507 = vmatpush1.msra.mxu0 0.0
        %508 = vmatprep.subr.mxu0 0.0
        %509 = vmatpush1.msra.mxu0 0.0
        %510 = vmatprep.subr.mxu0 0.0
        %511 = vmatpush1.msra.mxu0 0.0
        %512 = vmatprep.subr.mxu0 0.0
        %513 = vmatpush1.msra.mxu0 0.0
        %514 = vmatprep.subr.mxu0 0.0
        %515 = vmatpush1.msra.mxu0 0.0
        %516 = vmatprep.subr.mxu0 0.0
        %517 = vmatpush1.msra.mxu0 0.0
        %518 = vmatprep.subr.mxu0 0.0
        %519 = vmatpush1.msra.mxu0 0.0
        %520 = vmatprep.subr.mxu0 0.0
        %521 = vmatpush1.msra.mxu0 0.0
        %522 = vmatprep.subr.mxu0 0.0
        %523 = vmatpush1.msra.mxu0 0.0
        %524 = vmatprep.subr.mxu0 0.0
        %525 = vmatpush1.msra.mxu0 0.0
        %526 = vmatprep.subr.mxu0 0.0
        %527 = vmatpush1.msra.mxu0 0.0
        %528 = vmatprep.subr.mxu0 0.0
        %529 = vmatpush1.msra.mxu0 0.0
        %530 = vmatprep.subr.mxu0 0.0
        %531 = vmatpush1.msra.mxu0 0.0
        %532 = vmatprep.subr.mxu0 0.0
        %533 = vmatpush1.msra.mxu0 0.0
        %534 = vmatprep.subr.mxu0 0.0
        %535 = vmatpush1.msra.mxu0 0.0
        %536 = vmatprep.subr.mxu0 0.0
        %537 = vmatpush1.msra.mxu0 0.0
        %538 = vmatprep.subr.mxu0 0.0
        %539 = vmatpush1.msra.mxu0 0.0
        %540 = vmatprep.subr.mxu0 0.0
        %541 = vmatpush1.msra.mxu0 0.0
        %542 = vmatprep.subr.mxu0 0.0
        %543 = vmatpush1.msra.mxu0 0.0
        %544 = vmatprep.subr.mxu0 0.0
        %545 = vmatpush1.msra.mxu0 0.0
        %546 = vmatprep.subr.mxu0 0.0
        %547 = vmatpush1.msra.mxu0 0.0
        %548 = vmatprep.subr.mxu0 0.0
        %549 = vmatpush1.msra.mxu0 0.0
        %550 = vmatprep.subr.mxu0 0.0
        %551 = vmatpush1.msra.mxu0 0.0
        %552 = vmatprep.subr.mxu0 0.0
        %553 = vmatpush1.msra.mxu0 0.0
        %554 = vmatprep.subr.mxu0 0.0
        %555 = vmatpush1.msra.mxu0 0.0
        %556 = vmatprep.mubr.f32.mxu0 0.0
        %557 = vmatmul.mubr.f32.gmra.mrb[0].mxu0 %v490
        %v558 = vpop.f32.mrb[0].mxu0
        %v559 = vadd.f32 %v487, %v558
        %v560 = vpop.f32.mrb[0].mxu0
        %561 = vdwg.mxu0
        %v562 = vmax.f32 %v559, 0.0
        %v563 = vld [vmem:[%s6] sm:$0x1]
        %v565 = vlaneseq
        %v566 = vshrl.u32 %v565, 7
        %v567 = vsub.s32 0, %v566
        %v568 = vrot.slane %v563, %v567
        %v570 = vmul.f32 %v562, %v568
        %v571 = vsel %vm403, %v570, 0.0
        %572 = vadd.xlane.f32.xlu0 %v571
        %v573 = vpop.xlane.xlu0 %572
        %v574 = vld [vmem:[#allocation2] sm:$0x1]
        %v576 = vlaneseq
        %v577 = vshrl.u32 %v576, 7
        %v578 = vsub.s32 0, %v577
        %v579 = vrot.slane %v574, %v578
        %v581 = vadd.f32 %v573, %v579
        %v582 = vxor.u32 %v581, 2147483648
        %v583 = vmul.f32 %v582, 1.442695
        %v584 = vpow.pop %v583
        %v585 = vadd.f32 %v584, 1.0
        %v586 = vrcp.pop %v585
        %v587 = vmul.f32 1.0, %v586
        %vm588 = vcmask 7168
        %589 = vst.msk [vmem:[%s388] sm:$0xff] %vm588, %v587
        %p590 = scmp.lt.s32.totalorder %s28, 1
        %s591 = scalar_select %p590, %s28, 1
        %s592 = smul.addr %s591, 8
        %s593 = scalar_lea.vmem %s8, %s592
        // Predicated region
        $region69: #{tpu_custom_call.1} parent=51 // pred_check
          %p594 = pneg %p224
        $region70: #{tpu_custom_call.1} parent=51 // pred_check_branch
          %596 = sbr.rel (%p594) target = $region72
        $region71: #{tpu_custom_call.1} parent=51 // pred_region
          _
        $region72: #{tpu_custom_call.1} parent=51 // pred_fallthru
          _
      $region52: #{tpu_custom_call.1} parent=5 // pred_fallthru
        _
      %p597 = scmp.le.s32.totalorder 2, %s23
      // Predicated region
      $region73: #{tpu_custom_call.1} parent=5 // pred_check
        %p598 = pneg %p597
      $region74: #{tpu_custom_call.1} parent=5 // pred_check_branch
        %600 = sbr.rel (%p598) target = $region76
      $region75: #{tpu_custom_call.1} parent=5 // pred_region
        %s601 = ssub.s32 %s23, 2
        // Predicated region
        $region77: #{tpu_custom_call.1} parent=75 // pred_check
          %p602 = pneg %p230
        $region78: #{tpu_custom_call.1} parent=75 // pred_check_branch
          %604 = sbr.rel (%p602) target = $region80
        $region79: #{tpu_custom_call.1} parent=75 // pred_region
          %p605 = scmp.lt.s32.totalorder %s29, 1
          %s606 = scalar_select %p605, %s29, 1
          %s607 = smul.addr %s606, 8
          %s608 = scalar_lea.vmem %s8, %s607
        $region80: #{tpu_custom_call.1} parent=75 // pred_fallthru
          _
      $region76: #{tpu_custom_call.1} parent=5 // pred_fallthru
        _
    $region6: #{tpu_custom_call.1} parent=1 // loop_footer
      %s27 = sadd.s32 1, %s23
    $region7: #{tpu_custom_call.1} parent=1 // loop_footer_branch
      %22 = sbr.rel target = $region3
    $region8: #{tpu_custom_call.1} parent=1 // loop_exit
      _
    %609 = vsyncpa [#allocation4], 1
    %s610 = scalar_lea.sflag [#allocation4], 1
    %611 = vsyncpa %s610, 1
    %612 = vsyncpa [#allocation6], 1
    %s613 = scalar_lea.sflag [#allocation6], 1
    %614 = vsyncpa %s613, 1
    %615 = vsyncpa [#allocation9], 1

</llo_original>
